<compile_context>
chip_gen: v7x
topology: tpu7x:2x2x1
jax: 0.10.0
libtpu: 0.0.40
codegen_flags: <defaults>
</compile_context>

<pallas_src>
import functools

import jax
import jax.numpy as jnp
from jax.experimental import pallas as pl
from jax.experimental.pallas import tpu as pltpu


# ----------------------------------------------------------------------------
# Shape semantics (matches torch.Tensor.squeeze)
# ----------------------------------------------------------------------------
def _squeezed_shape(shape, dim):
    if dim is None:
        return tuple(s for s in shape if s != 1)
    d = dim
    if d < 0:
        d += len(shape)
    if not (0 <= d < len(shape)):
        raise ValueError(f"dim {dim} out of range for shape {shape}")
    if shape[d] != 1:
        return tuple(shape)  # torch: no-op when the axis is not size 1
    return tuple(s for i, s in enumerate(shape) if i != d)


# ----------------------------------------------------------------------------
# Optional Pallas identity copy: direct HBM->HBM DMA (no VMEM staging)
# ----------------------------------------------------------------------------
_MIN_PALLAS_BYTES = 1 << 20  # below this, launch overhead dominates -> reshape


def _pick_lane_dense_layout(total):
    """(rows, lanes) with lanes a multiple of 128 dividing `total`, or None."""
    for lanes in (1024, 512, 256, 128):
        if total % lanes == 0:
            return total // lanes, lanes
    return None


def _pick_chunks(rows):
    """Split the copy into a few equal, 32-row-aligned chunks (else 1 DMA).

    A handful of concurrently issued DMAs keeps the HBM pipes busy on
    medium-size copies; chunk boundaries at multiples of 32 rows keep every
    DMA aligned to the HBM tile layout for any dtype (f32/bf16/int8).
    """
    for n in (4, 2):
        if rows % n == 0 and (rows // n) % 32 == 0:
            return n, rows // n
    return 1, rows


def _dma_copy_kernel(x_hbm, o_hbm, sem, *, n_chunks, chunk_rows):
    if n_chunks == 1:
        cp = pltpu.make_async_copy(x_hbm, o_hbm, sem.at[0])
        cp.start()
        cp.wait()
        return
    copies = []
    for c in range(n_chunks):  # static, tiny unrolled loop
        start = c * chunk_rows
        cp = pltpu.make_async_copy(
            x_hbm.at[pl.ds(start, chunk_rows), :],
            o_hbm.at[pl.ds(start, chunk_rows), :],
            sem.at[c],
        )
        cp.start()
        copies.append(cp)
    for cp in copies:  # all DMAs in flight before the first wait
        cp.wait()


def _identity_copy_pallas(x):
    """HBM->HBM DMA copy of `x` (lane-dense 2D view), or None if not possible."""
    total = x.size
    layout = _pick_lane_dense_layout(total)
    if layout is None:
        return None
    rows, lanes = layout
    itemsize = jnp.dtype(x.dtype).itemsize
    n_chunks, chunk_rows = _pick_chunks(rows)

    x2d = jnp.reshape(x, (rows, lanes))
    kernel = functools.partial(
        _dma_copy_kernel, n_chunks=n_chunks, chunk_rows=chunk_rows
    )
    y2d = pl.pallas_call(
        kernel,
        out_shape=jax.ShapeDtypeStruct((rows, lanes), x.dtype),
        in_specs=[pl.BlockSpec(memory_space=pl.ANY)],
        out_specs=pl.BlockSpec(memory_space=pl.ANY),
        scratch_shapes=[pltpu.SemaphoreType.DMA((n_chunks,))],
        cost_estimate=pl.CostEstimate(
            flops=0,
            transcendentals=0,
            bytes_accessed=2 * total * itemsize,
        ),
    )(x2d)
    return y2d


# ----------------------------------------------------------------------------
# Public API
# ----------------------------------------------------------------------------
def squeeze_pallas(x, dim=None, use_pallas_copy=False,
                   min_pallas_bytes=_MIN_PALLAS_BYTES):
    out_shape = _squeezed_shape(x.shape, dim)

    # torch no-op squeeze (dim given, axis not size 1): return x as-is.
    if out_shape == tuple(x.shape):
        return x

    total_bytes = x.size * jnp.dtype(x.dtype).itemsize
    # Default / degenerate / tiny inputs: metadata-only reshape (zero cost).
    if (not use_pallas_copy) or x.ndim == 0 or x.size == 0 \
            or total_bytes < min_pallas_bytes:
        return jnp.reshape(x, out_shape)

    y2d = _identity_copy_pallas(x)
    if y2d is None:
        # Element count not a multiple of 128: lane-dense DMA view impossible;
        # the metadata reshape is exact and strictly cheaper.
        return jnp.reshape(x, out_shape)
    return jnp.reshape(y2d, out_shape)


class SqueezePallas:
    """JAX/Pallas equivalent of the PyTorch Squeeze module."""

    def __init__(self, dim=None, use_pallas_copy=False):
        self.dim = dim  # module has no parameters
        self.use_pallas_copy = use_pallas_copy

    def __call__(self, x):
        return squeeze_pallas(x, self.dim, use_pallas_copy=self.use_pallas_copy)


# ----------------------------------------------------------------------------
# Self-test
# ----------------------------------------------------------------------------
if __name__ == "__main__":
    key = jax.random.PRNGKey(0)

    # Small NCHW-style input with a squeezable channel dim: (2, 1, 16, 16).
    x = jax.random.normal(key, (2, 1, 16, 16), dtype=jnp.float32)

    # --- Default path: pure metadata squeeze (recommended, no kernel) ------
    y1 = SqueezePallas(dim=1)(x)
    jax.block_until_ready(y1)
    assert y1.shape == (2, 16, 16), y1.shape
    assert jnp.array_equal(y1, jnp.squeeze(x, axis=1)), "value mismatch (dim=1)"

    y2 = SqueezePallas(dim=None)(x)
    jax.block_until_ready(y2)
    assert y2.shape == (2, 16, 16), y2.shape
    assert jnp.array_equal(y2, jnp.squeeze(x)), "value mismatch (dim=None)"

    y3 = SqueezePallas(dim=0)(x)  # dim points at a non-size-1 axis -> no-op
    jax.block_until_ready(y3)
    assert y3.shape == x.shape, y3.shape
    assert jnp.array_equal(y3, x), "value mismatch (no-op squeeze)"

    y4 = squeeze_pallas(x, dim=-3)  # negative dim
    jax.block_until_ready(y4)
    assert y4.shape == (2, 16, 16), y4.shape

    xe = jnp.zeros((0, 1, 4), dtype=jnp.float32)  # empty-tensor path
    ye = squeeze_pallas(xe, dim=1)
    jax.block_until_ready(ye)
    assert ye.shape == (0, 4), ye.shape

    # --- Pallas copy path: tiny input short-circuits to reshape ------------
    y1k = squeeze_pallas(x, dim=1, use_pallas_copy=True)
    jax.block_until_ready(y1k)
    assert y1k.shape == (2, 16, 16), y1k.shape
    assert jnp.array_equal(y1k, jnp.squeeze(x, axis=1)), "mismatch (tiny copy)"

    # --- Pallas copy path: direct HBM->HBM DMA kernel (2 MiB input) --------
    xl = jax.random.normal(jax.random.PRNGKey(1), (8, 1, 256, 256),
                           dtype=jnp.float32)
    ylk = squeeze_pallas(xl, dim=1, use_pallas_copy=True)
    jax.block_until_ready(ylk)
    assert ylk.shape == (8, 256, 256), ylk.shape
    assert jnp.array_equal(ylk, jnp.squeeze(xl, axis=1)), "DMA kernel mismatch"

    # --- Pallas copy path: non-128-multiple element count falls back -------
    xo = jax.random.normal(jax.random.PRNGKey(2), (3, 1, 5, 7),
                           dtype=jnp.float32)
    yo = squeeze_pallas(xo, dim=1, use_pallas_copy=True, min_pallas_bytes=0)
    jax.block_until_ready(yo)
    assert yo.shape == (3, 5, 7), yo.shape
    assert jnp.array_equal(yo, jnp.squeeze(xo, axis=1)), "fallback mismatch"

    print("KERNEL_OK")
</pallas_src>

<mosaic_0001>
module attributes {stable_mosaic.version = 11 : i64} {
  func.func @_dma_copy_kernel(%arg0: memref<512x1024xf32, #tpu.memory_space<any>>, %arg1: memref<512x1024xf32, #tpu.memory_space<any>>, %arg2: memref<4x!tpu.dma_semaphore, #tpu.memory_space<semaphore_mem>>) attributes {dimension_semantics = [], scalar_prefetch = 0 : i64, scratch_operands = 1 : i64, tpu.core_type = #tpu.core_type<tc>} {
    %c0_i32 = arith.constant 0 : i32
    %c0_i32_0 = arith.constant 0 : i32
    %c0_i32_1 = arith.constant 0 : i32
    %0 = tpu.memref_slice %arg0[%c0_i32_0, %c0_i32_1] : memref<512x1024xf32, #tpu.memory_space<any>> -> memref<128x1024xf32, #tpu.memory_space<any>>
    %c0_i32_2 = arith.constant 0 : i32
    %c0_i32_3 = arith.constant 0 : i32
    %1 = tpu.memref_slice %arg1[%c0_i32_2, %c0_i32_3] : memref<512x1024xf32, #tpu.memory_space<any>> -> memref<128x1024xf32, #tpu.memory_space<any>>
    %2 = tpu.memref_slice %arg2[%c0_i32] : memref<4x!tpu.dma_semaphore, #tpu.memory_space<semaphore_mem>> -> memref<1x!tpu.dma_semaphore, #tpu.memory_space<semaphore_mem>>
    %3 = tpu.memref_squeeze %2 : memref<1x!tpu.dma_semaphore, #tpu.memory_space<semaphore_mem>> -> memref<!tpu.dma_semaphore, #tpu.memory_space<semaphore_mem>>
    tpu.enqueue_dma source(%0 : memref<128x1024xf32, #tpu.memory_space<any>>) target(%1 : memref<128x1024xf32, #tpu.memory_space<any>>) target_semaphore(%3 : memref<!tpu.dma_semaphore, #tpu.memory_space<semaphore_mem>>)
    %c1_i32 = arith.constant 1 : i32
    %c128_i32 = arith.constant 128 : i32
    %c0_i32_4 = arith.constant 0 : i32
    %4 = tpu.memref_slice %arg0[%c128_i32, %c0_i32_4] : memref<512x1024xf32, #tpu.memory_space<any>> -> memref<128x1024xf32, #tpu.memory_space<any>>
    %c128_i32_5 = arith.constant 128 : i32
    %c0_i32_6 = arith.constant 0 : i32
    %5 = tpu.memref_slice %arg1[%c128_i32_5, %c0_i32_6] : memref<512x1024xf32, #tpu.memory_space<any>> -> memref<128x1024xf32, #tpu.memory_space<any>>
    %6 = tpu.memref_slice %arg2[%c1_i32] : memref<4x!tpu.dma_semaphore, #tpu.memory_space<semaphore_mem>> -> memref<1x!tpu.dma_semaphore, #tpu.memory_space<semaphore_mem>>
    %7 = tpu.memref_squeeze %6 : memref<1x!tpu.dma_semaphore, #tpu.memory_space<semaphore_mem>> -> memref<!tpu.dma_semaphore, #tpu.memory_space<semaphore_mem>>
    tpu.enqueue_dma source(%4 : memref<128x1024xf32, #tpu.memory_space<any>>) target(%5 : memref<128x1024xf32, #tpu.memory_space<any>>) target_semaphore(%7 : memref<!tpu.dma_semaphore, #tpu.memory_space<semaphore_mem>>)
    %c2_i32 = arith.constant 2 : i32
    %c256_i32 = arith.constant 256 : i32
    %c0_i32_7 = arith.constant 0 : i32
    %8 = tpu.memref_slice %arg0[%c256_i32, %c0_i32_7] : memref<512x1024xf32, #tpu.memory_space<any>> -> memref<128x1024xf32, #tpu.memory_space<any>>
    %c256_i32_8 = arith.constant 256 : i32
    %c0_i32_9 = arith.constant 0 : i32
    %9 = tpu.memref_slice %arg1[%c256_i32_8, %c0_i32_9] : memref<512x1024xf32, #tpu.memory_space<any>> -> memref<128x1024xf32, #tpu.memory_space<any>>
    %10 = tpu.memref_slice %arg2[%c2_i32] : memref<4x!tpu.dma_semaphore, #tpu.memory_space<semaphore_mem>> -> memref<1x!tpu.dma_semaphore, #tpu.memory_space<semaphore_mem>>
    %11 = tpu.memref_squeeze %10 : memref<1x!tpu.dma_semaphore, #tpu.memory_space<semaphore_mem>> -> memref<!tpu.dma_semaphore, #tpu.memory_space<semaphore_mem>>
    tpu.enqueue_dma source(%8 : memref<128x1024xf32, #tpu.memory_space<any>>) target(%9 : memref<128x1024xf32, #tpu.memory_space<any>>) target_semaphore(%11 : memref<!tpu.dma_semaphore, #tpu.memory_space<semaphore_mem>>)
    %c3_i32 = arith.constant 3 : i32
    %c384_i32 = arith.constant 384 : i32
    %c0_i32_10 = arith.constant 0 : i32
    %12 = tpu.memref_slice %arg0[%c384_i32, %c0_i32_10] : memref<512x1024xf32, #tpu.memory_space<any>> -> memref<128x1024xf32, #tpu.memory_space<any>>
    %c384_i32_11 = arith.constant 384 : i32
    %c0_i32_12 = arith.constant 0 : i32
    %13 = tpu.memref_slice %arg1[%c384_i32_11, %c0_i32_12] : memref<512x1024xf32, #tpu.memory_space<any>> -> memref<128x1024xf32, #tpu.memory_space<any>>
    %14 = tpu.memref_slice %arg2[%c3_i32] : memref<4x!tpu.dma_semaphore, #tpu.memory_space<semaphore_mem>> -> memref<1x!tpu.dma_semaphore, #tpu.memory_space<semaphore_mem>>
    %15 = tpu.memref_squeeze %14 : memref<1x!tpu.dma_semaphore, #tpu.memory_space<semaphore_mem>> -> memref<!tpu.dma_semaphore, #tpu.memory_space<semaphore_mem>>
    tpu.enqueue_dma source(%12 : memref<128x1024xf32, #tpu.memory_space<any>>) target(%13 : memref<128x1024xf32, #tpu.memory_space<any>>) target_semaphore(%15 : memref<!tpu.dma_semaphore, #tpu.memory_space<semaphore_mem>>)
    %c0_i32_13 = arith.constant 0 : i32
    %c0_i32_14 = arith.constant 0 : i32
    %c0_i32_15 = arith.constant 0 : i32
    %16 = tpu.memref_slice %arg0[%c0_i32_14, %c0_i32_15] : memref<512x1024xf32, #tpu.memory_space<any>> -> memref<128x1024xf32, #tpu.memory_space<any>>
    %c0_i32_16 = arith.constant 0 : i32
    %c0_i32_17 = arith.constant 0 : i32
    %17 = tpu.memref_slice %arg1[%c0_i32_16, %c0_i32_17] : memref<512x1024xf32, #tpu.memory_space<any>> -> memref<128x1024xf32, #tpu.memory_space<any>>
    %18 = tpu.memref_slice %arg2[%c0_i32_13] : memref<4x!tpu.dma_semaphore, #tpu.memory_space<semaphore_mem>> -> memref<1x!tpu.dma_semaphore, #tpu.memory_space<semaphore_mem>>
    %19 = tpu.memref_squeeze %18 : memref<1x!tpu.dma_semaphore, #tpu.memory_space<semaphore_mem>> -> memref<!tpu.dma_semaphore, #tpu.memory_space<semaphore_mem>>
    tpu.wait_dma2 semaphore(%19 : memref<!tpu.dma_semaphore, #tpu.memory_space<semaphore_mem>>) src(%16 : memref<128x1024xf32, #tpu.memory_space<any>>) dst(%17 : memref<128x1024xf32, #tpu.memory_space<any>>)
    %c1_i32_18 = arith.constant 1 : i32
    %c128_i32_19 = arith.constant 128 : i32
    %c0_i32_20 = arith.constant 0 : i32
    %20 = tpu.memref_slice %arg0[%c128_i32_19, %c0_i32_20] : memref<512x1024xf32, #tpu.memory_space<any>> -> memref<128x1024xf32, #tpu.memory_space<any>>
    %c128_i32_21 = arith.constant 128 : i32
    %c0_i32_22 = arith.constant 0 : i32
    %21 = tpu.memref_slice %arg1[%c128_i32_21, %c0_i32_22] : memref<512x1024xf32, #tpu.memory_space<any>> -> memref<128x1024xf32, #tpu.memory_space<any>>
    %22 = tpu.memref_slice %arg2[%c1_i32_18] : memref<4x!tpu.dma_semaphore, #tpu.memory_space<semaphore_mem>> -> memref<1x!tpu.dma_semaphore, #tpu.memory_space<semaphore_mem>>
    %23 = tpu.memref_squeeze %22 : memref<1x!tpu.dma_semaphore, #tpu.memory_space<semaphore_mem>> -> memref<!tpu.dma_semaphore, #tpu.memory_space<semaphore_mem>>
    tpu.wait_dma2 semaphore(%23 : memref<!tpu.dma_semaphore, #tpu.memory_space<semaphore_mem>>) src(%20 : memref<128x1024xf32, #tpu.memory_space<any>>) dst(%21 : memref<128x1024xf32, #tpu.memory_space<any>>)
    %c2_i32_23 = arith.constant 2 : i32
    %c256_i32_24 = arith.constant 256 : i32
    %c0_i32_25 = arith.constant 0 : i32
    %24 = tpu.memref_slice %arg0[%c256_i32_24, %c0_i32_25] : memref<512x1024xf32, #tpu.memory_space<any>> -> memref<128x1024xf32, #tpu.memory_space<any>>
    %c256_i32_26 = arith.constant 256 : i32
    %c0_i32_27 = arith.constant 0 : i32
    %25 = tpu.memref_slice %arg1[%c256_i32_26, %c0_i32_27] : memref<512x1024xf32, #tpu.memory_space<any>> -> memref<128x1024xf32, #tpu.memory_space<any>>
    %26 = tpu.memref_slice %arg2[%c2_i32_23] : memref<4x!tpu.dma_semaphore, #tpu.memory_space<semaphore_mem>> -> memref<1x!tpu.dma_semaphore, #tpu.memory_space<semaphore_mem>>
    %27 = tpu.memref_squeeze %26 : memref<1x!tpu.dma_semaphore, #tpu.memory_space<semaphore_mem>> -> memref<!tpu.dma_semaphore, #tpu.memory_space<semaphore_mem>>
    tpu.wait_dma2 semaphore(%27 : memref<!tpu.dma_semaphore, #tpu.memory_space<semaphore_mem>>) src(%24 : memref<128x1024xf32, #tpu.memory_space<any>>) dst(%25 : memref<128x1024xf32, #tpu.memory_space<any>>)
    %c3_i32_28 = arith.constant 3 : i32
    %c384_i32_29 = arith.constant 384 : i32
    %c0_i32_30 = arith.constant 0 : i32
    %28 = tpu.memref_slice %arg0[%c384_i32_29, %c0_i32_30] : memref<512x1024xf32, #tpu.memory_space<any>> -> memref<128x1024xf32, #tpu.memory_space<any>>
    %c384_i32_31 = arith.constant 384 : i32
    %c0_i32_32 = arith.constant 0 : i32
    %29 = tpu.memref_slice %arg1[%c384_i32_31, %c0_i32_32] : memref<512x1024xf32, #tpu.memory_space<any>> -> memref<128x1024xf32, #tpu.memory_space<any>>
    %30 = tpu.memref_slice %arg2[%c3_i32_28] : memref<4x!tpu.dma_semaphore, #tpu.memory_space<semaphore_mem>> -> memref<1x!tpu.dma_semaphore, #tpu.memory_space<semaphore_mem>>
    %31 = tpu.memref_squeeze %30 : memref<1x!tpu.dma_semaphore, #tpu.memory_space<semaphore_mem>> -> memref<!tpu.dma_semaphore, #tpu.memory_space<semaphore_mem>>
    tpu.wait_dma2 semaphore(%31 : memref<!tpu.dma_semaphore, #tpu.memory_space<semaphore_mem>>) src(%28 : memref<128x1024xf32, #tpu.memory_space<any>>) dst(%29 : memref<128x1024xf32, #tpu.memory_space<any>>)
    return
  }
}

</mosaic_0001>

<llo_original>
// kernel: tpu_custom_call.1
$region0: #{tpu_custom_call.1}
  #allocation0 [shape = 'u32[]', space=smem, size = 0x4, offset = 0x4, fixed_abs, tag = 'smem constant byte address 0x4 - core index']
  #allocation1 [shape = 'u32[144,128]{1,0:T(1,128)}', space=vmem, size = 0x12000, scoped, tag = 'internal scratch']
  #allocation2 [shape = 's32[4]{0}', space=sflag, size = 0x10, scoped, tag = 'scratch operand']
  #allocation3 [shape = 's32[]', space=sflag, size = 0x4, offset = 0, fixed_abs, tag = 'sflag constant byte address 0x0 - dummy sync flag']
  #allocation4 [shape = 'u32[0]{0}', space=smem, size = 0, offset = 0, fixed_abs, tag = 'smem constant byte address 0x0 - null']
  #allocation5 [shape = 's32[]', space=sflag, size = 0x4, offset = 0, fixed_abs, tag = 'sflag constant byte address 0x0 - dummy sync flag']
  #allocation6 [shape = 'u32[0]{0}', space=smem, size = 0, offset = 0, fixed_abs, tag = 'smem constant byte address 0x0 - null']
  #allocation7 [shape = 's32[]', space=sflag, size = 0x4, offset = 0, fixed_abs, tag = 'sflag constant byte address 0x0 - dummy sync flag']
  #allocation8 [shape = 'u32[0]{0}', space=smem, size = 0, offset = 0, fixed_abs, tag = 'smem constant byte address 0x0 - null']
  #allocation9 [shape = 's32[]', space=sflag, size = 0x4, offset = 0, fixed_abs, tag = 'sflag constant byte address 0x0 - dummy sync flag']
  #allocation10 [shape = 'u32[0]{0}', space=smem, size = 0, offset = 0, fixed_abs, tag = 'smem constant byte address 0x0 - null']
  %s0 = inlined_call_operand.hbm [shape: f32[512,1024], index: 0, kind: input, shape index: {}]
  %s1 = inlined_call_operand.hbm [shape: f32[512,1024], index: 1, kind: output, shape index: {}]
  %s2 = sld [smem:[#allocation0]]
  $region2: #{tpu_custom_call.1} parent=0
    _
  %s4 = ssub.s32 1, %s2
  %s5 = scalar_select 0, %s4, %s2
  %s7 = sshll.u32 1, 14
  %s8 = sxor.u32 4294967295, %s7
  %s11 = sshll.u32 3, 24
  %s12 = sxor.u32 4294967295, %s11
  %s13 = sand.u32 0, %s12
  %s15 = sor.u32 %s13, 0
  %18 = dma.general %s0, 16384, %s1, [#allocation2], [#allocation3], [#allocation4], %s15, 0
  %s19 = scalar_lea.hbm %s0, 16384
  %s20 = scalar_lea.hbm %s1, 16384
  %s21 = scalar_lea.sflag [#allocation2], 1
  %s23 = sshll.u32 1, 14
  %s24 = sxor.u32 4294967295, %s23
  %s27 = sshll.u32 3, 24
  %s28 = sxor.u32 4294967295, %s27
  %s29 = sand.u32 0, %s28
  %s31 = sor.u32 %s29, 0
  %34 = dma.general %s19, 16384, %s20, %s21, [#allocation5], [#allocation6], %s31, 0
  %s35 = scalar_lea.hbm %s0, 32768
  %s36 = scalar_lea.hbm %s1, 32768
  %s37 = scalar_lea.sflag [#allocation2], 2
  %s39 = sshll.u32 1, 14
  %s40 = sxor.u32 4294967295, %s39
  %s43 = sshll.u32 3, 24
  %s44 = sxor.u32 4294967295, %s43
  %s45 = sand.u32 0, %s44
  %s47 = sor.u32 %s45, 0
  %50 = dma.general %s35, 16384, %s36, %s37, [#allocation7], [#allocation8], %s47, 0
  %s51 = scalar_lea.hbm %s0, 49152
  %s52 = scalar_lea.hbm %s1, 49152
  %s53 = scalar_lea.sflag [#allocation2], 3
  %s55 = sshll.u32 1, 14
  %s56 = sxor.u32 4294967295, %s55
  %s59 = sshll.u32 3, 24
  %s60 = sxor.u32 4294967295, %s59
  %s61 = sand.u32 0, %s60
  %s63 = sor.u32 %s61, 0
  %66 = dma.general %s51, 16384, %s52, %s53, [#allocation9], [#allocation10], %s63, 0
  %s67 = smul.u32 8, 16
  %s68 = smul.u32 %s67, 8
  %s69 = sshll.u32 %s68, 4
  %70 = dma.done [#allocation2], %s69
  %s71 = sshll.u32 %s68, 4
  %72 = dma.done %s21, %s71
  %s73 = sshll.u32 %s68, 4
  %74 = dma.done %s37, %s73
  %s75 = sshll.u32 %s68, 4
  %76 = dma.done %s53, %s75
  %77 = vsyncmov [#allocation2]
  %s78 = vpop.sfrf %77
  %p79 = scmp.eq.s32.totalorder %s78, 0
  %p80 = pneg %p79
  %82 = shalt.err (%p80)
  %s83 = scalar_lea.sflag [#allocation2], 1
  %84 = vsyncmov %s83
  %s85 = vpop.sfrf %84
  %p86 = scmp.eq.s32.totalorder %s85, 0
  %p87 = pneg %p86
  %89 = shalt.err (%p87)
  %s90 = scalar_lea.sflag [#allocation2], 2
  %91 = vsyncmov %s90
  %s92 = vpop.sfrf %91
  %p93 = scmp.eq.s32.totalorder %s92, 0
  %p94 = pneg %p93
  %96 = shalt.err (%p94)
  %s97 = scalar_lea.sflag [#allocation2], 3
  %98 = vsyncmov %s97
  %s99 = vpop.sfrf %98
  %p100 = scmp.eq.s32.totalorder %s99, 0
  %p101 = pneg %p100
  %103 = shalt.err (%p101)

</llo_original>
